<compile_context>
chip_gen: v5e
topology: v5e:2x2
jax: 0.10.0
libtpu: 0.0.40
codegen_flags: <defaults>
</compile_context>

<pallas_src>
import functools
import math

import jax
import jax.numpy as jnp
from jax.experimental import pallas as pl
from jax.experimental.pallas import tpu as pltpu

LANE = 128
_SUBLANES = 8
MAX_BLOCK_ROWS = 8192            # 8192 x 128 x 4B = 4 MiB per f32 input block
_VMEM_LIMIT_BYTES = 32 * 1024 * 1024
_NLOG_EPS = -math.log(1e-10)     # ~= 23.0259; clamp emulating log(x + 1e-10)


def _sublane_multiple(dtype):
    # 8 for 32-bit, 16 for 16-bit, 32 for 8-bit/bool inputs.
    return max(_SUBLANES, 256 // (jnp.dtype(dtype).itemsize * 8))


def _make_focal_kernel(gamma, block_rows, valid_rows, ragged):
    gamma = float(gamma)
    int_gamma = gamma.is_integer() and 0.0 < gamma <= 8.0
    n_fold = block_rows // _SUBLANES

    def kernel(x_ref, t_ref, out_ref):
        x = x_ref[...].astype(jnp.float32)
        t = t_ref[...].astype(jnp.float32)

        # softplus(x) = max(x,0) + log1p(exp(-|x|))   (1 exp + 1 log1p on EUP)
        sp = jnp.maximum(x, 0.0) + jnp.log1p(jnp.exp(-jnp.abs(x)))
        # -log(sigmoid(x))   = softplus(-x) = sp - x
        # -log(1-sigmoid(x)) = softplus(x)  = sp
        # clamp at -log(1e-10) to emulate the module's log(p + 1e-10) floor
        nlog_p = jnp.minimum(sp - x, _NLOG_EPS)
        nlog_1mp = jnp.minimum(sp, _NLOG_EPS)

        if gamma == 0.0:
            a = nlog_p
            b = nlog_1mp
        elif int_gamma:
            p = jnp.exp(x - sp)               # sigmoid(x), reuses log-sigmoid
            one_m_p = 1.0 - p
            w_pos = one_m_p
            w_neg = p
            for _ in range(int(gamma) - 1):   # VPU multiplies, no pow / EUP
                w_pos = w_pos * one_m_p
                w_neg = w_neg * p
            a = w_pos * nlog_p
            b = w_neg * nlog_1mp
        else:
            a = jnp.exp(-gamma * sp) * nlog_p            # (1-p)^g * -log(p)
            b = jnp.exp(gamma * (x - sp)) * nlog_1mp     # p^g * -log(1-p)

        loss = b + t * (a - b)                # == t*a + (1-t)*b

        def _reduce_write(vals):
            # Fold block_rows down to one native (8,128) tile with VPU adds;
            # the reshape is layout-identity (each (8,128) slice is a vreg).
            out_ref[...] = jnp.sum(
                vals.reshape(n_fold, _SUBLANES, LANE), axis=0)[None]

        if not ragged:
            _reduce_write(loss)
        else:
            # Row-granular mask, executed only on the last (overhanging) block.
            i = pl.program_id(0)
            last = pl.num_programs(0) - 1

            @pl.when(i != last)
            def _():
                _reduce_write(loss)

            @pl.when(i == last)
            def _():
                row = (i * block_rows
                       + jax.lax.broadcasted_iota(jnp.int32, loss.shape, 0))
                _reduce_write(jnp.where(row < valid_rows, loss, 0.0))

    return kernel


def _focal_tail_sum(x, t, gamma):
    """Plain-jnp loss sum for the tiny non-aligned remainder (< sub*128)."""
    x = x.astype(jnp.float32)
    t = t.astype(jnp.float32)
    sp = jnp.maximum(x, 0.0) + jnp.log1p(jnp.exp(-jnp.abs(x)))
    nlog_p = jnp.minimum(sp - x, _NLOG_EPS)
    nlog_1mp = jnp.minimum(sp, _NLOG_EPS)
    if gamma == 0.0:
        a, b = nlog_p, nlog_1mp
    else:
        a = jnp.exp(-gamma * sp) * nlog_p
        b = jnp.exp(gamma * (x - sp)) * nlog_1mp
    return jnp.sum(b + t * (a - b))


@functools.partial(jax.jit, static_argnames=("gamma",))
def focal_binary_loss(inp, target, gamma=0.0):
    """Matches FocalBinaryLoss.forward: mean(elementwise focal loss) * 4."""
    assert inp.shape == target.shape
    gamma = float(gamma)
    numel = int(inp.size)
    flat_x = inp.reshape(-1)
    flat_t = target.reshape(-1)

    sub = max(_sublane_multiple(inp.dtype), _sublane_multiple(target.dtype))
    rows = numel // LANE
    main_rows = (rows // sub) * sub           # sublane-aligned full-lane rows
    main_elems = main_rows * LANE

    total = jnp.float32(0.0)

    if main_rows > 0:
        if main_elems == numel:
            x2d = flat_x.reshape(main_rows, LANE)     # free reshape, no copy
            t2d = flat_t.reshape(main_rows, LANE)
        else:
            # TODO(synk): lane-ragged numel needs a prefix slice (one copy);
            # typical NCHW losses have numel % 128 == 0 and skip this path.
            x2d = jax.lax.slice(flat_x, (0,), (main_elems,)).reshape(
                main_rows, LANE)
            t2d = jax.lax.slice(flat_t, (0,), (main_elems,)).reshape(
                main_rows, LANE)

        num_blocks = pl.cdiv(main_rows, MAX_BLOCK_ROWS)
        if num_blocks == 1 and main_rows >= 2 * sub:
            num_blocks = 2                    # keep both v7x TensorCores busy
        block_rows = max(sub, ((main_rows // num_blocks) // sub) * sub)
        num_blocks = pl.cdiv(main_rows, block_rows)
        ragged = (num_blocks * block_rows) != main_rows

        partial = pl.pallas_call(
            _make_focal_kernel(gamma, block_rows, main_rows, ragged),
            out_shape=jax.ShapeDtypeStruct(
                (num_blocks, _SUBLANES, LANE), jnp.float32),
            grid_spec=pltpu.PrefetchScalarGridSpec(
                num_scalar_prefetch=0,
                grid=(num_blocks,),
                in_specs=[
                    pl.BlockSpec((block_rows, LANE), lambda i: (i, 0)),
                    pl.BlockSpec((block_rows, LANE), lambda i: (i, 0)),
                ],
                out_specs=pl.BlockSpec((1, _SUBLANES, LANE),
                                       lambda i: (i, 0, 0)),
            ),
            compiler_params=pltpu.CompilerParams(
                dimension_semantics=("parallel",),
                vmem_limit_bytes=_VMEM_LIMIT_BYTES),
        )(x2d, t2d)
        total = jnp.sum(partial)

    if main_elems != numel:
        xt = jax.lax.slice(flat_x, (main_elems,), (numel,))
        tt = jax.lax.slice(flat_t, (main_elems,), (numel,))
        total = total + _focal_tail_sum(xt, tt, gamma)

    return (total / jnp.float32(numel)) * 4.0


def _reference(inp, target, gamma=0.0):
    x = inp.astype(jnp.float32)
    t = target.astype(jnp.float32)
    p = jax.nn.sigmoid(x)
    loss = (-t * jnp.power(1.0 - p, gamma) * jnp.log(p + 1e-10)
            - (1.0 - t) * jnp.power(p, gamma) * jnp.log(1.0 - p + 1e-10))
    return jnp.mean(loss) * 4.0


if __name__ == "__main__":
    key = jax.random.PRNGKey(0)
    k1, k2, k3, k4 = jax.random.split(key, 4)

    # NCHW logits and binary targets, small shapes.
    x = jax.random.normal(k1, (2, 4, 16, 16), dtype=jnp.float32)
    tgt = (jax.random.uniform(k2, (2, 4, 16, 16)) > 0.5).astype(jnp.float32)

    # Default gamma=0 path.
    out0 = jax.block_until_ready(focal_binary_loss(x, tgt, gamma=0.0))
    ref0 = _reference(x, tgt, gamma=0.0)
    assert jnp.allclose(out0, ref0, rtol=1e-5, atol=1e-5), (out0, ref0)

    # Integer-gamma fast path (common gamma=2).
    out2 = jax.block_until_ready(focal_binary_loss(x, tgt, gamma=2.0))
    ref2 = _reference(x, tgt, gamma=2.0)
    assert jnp.allclose(out2, ref2, rtol=1e-5, atol=1e-5), (out2, ref2)

    # Non-lane-aligned shape + non-integer gamma exercises the jnp tail path
    # and the exp(gamma*log) branch.
    x3 = jax.random.normal(k3, (3, 5, 7, 11), dtype=jnp.float32)
    t3 = (jax.random.uniform(k4, (3, 5, 7, 11)) > 0.5).astype(jnp.float32)
    out3 = jax.block_until_ready(focal_binary_loss(x3, t3, gamma=1.5))
    ref3 = _reference(x3, t3, gamma=1.5)
    assert jnp.allclose(out3, ref3, rtol=1e-4, atol=1e-5), (out3, ref3)

    print("KERNEL_OK")
</pallas_src>

<mosaic_0001>
module attributes {stable_mosaic.version = 11 : i64} {
  func.func @kernel(%arg0: i32, %arg1: memref<8x128xf32, #tpu.memory_space<vmem>>, %arg2: memref<8x128xf32, #tpu.memory_space<vmem>>, %arg3: memref<1x8x128xf32, #tpu.memory_space<vmem>>) attributes {dimension_semantics = [#tpu.dimension_semantics<parallel>], iteration_bounds = array<i64: 2>, scalar_prefetch = 0 : i64, scratch_operands = 0 : i64, tpu.core_type = #tpu.core_type<tc>, window_params = [{transform_indices = @transform_0, window_bounds = array<i64: 8, 128>}, {transform_indices = @transform_1, window_bounds = array<i64: 8, 128>}, {transform_indices = @transform_2, window_bounds = array<i64: 1, 8, 128>}]} {
    %c0 = arith.constant 0 : index
    %c0_0 = arith.constant 0 : index
    %0 = vector.load %arg1[%c0, %c0_0] : memref<8x128xf32, #tpu.memory_space<vmem>>, vector<8x128xf32>
    %c0_1 = arith.constant 0 : index
    %c0_2 = arith.constant 0 : index
    %1 = vector.load %arg2[%c0_1, %c0_2] : memref<8x128xf32, #tpu.memory_space<vmem>>, vector<8x128xf32>
    %cst = arith.constant 0.000000e+00 : f32
    %2 = vector.broadcast %cst : f32 to vector<8x128xf32>
    %3 = arith.maximumf %0, %2 : vector<8x128xf32>
    %4 = math.absf %0 : vector<8x128xf32>
    %cst_3 = arith.constant 0.000000e+00 : f32
    %5 = vector.broadcast %cst_3 : f32 to vector<8x128xf32>
    %6 = arith.subf %5, %4 : vector<8x128xf32>
    %7 = math.exp %6 : vector<8x128xf32>
    %8 = math.log1p %7 : vector<8x128xf32>
    %9 = arith.addf %3, %8 : vector<8x128xf32>
    %10 = arith.subf %9, %0 : vector<8x128xf32>
    %cst_4 = arith.constant 23.0258503 : f32
    %11 = vector.broadcast %cst_4 : f32 to vector<8x128xf32>
    %12 = arith.minimumf %10, %11 : vector<8x128xf32>
    %cst_5 = arith.constant 23.0258503 : f32
    %13 = vector.broadcast %cst_5 : f32 to vector<8x128xf32>
    %14 = arith.minimumf %9, %13 : vector<8x128xf32>
    %15 = arith.subf %12, %14 : vector<8x128xf32>
    %16 = arith.mulf %1, %15 : vector<8x128xf32>
    %17 = arith.addf %14, %16 : vector<8x128xf32>
    %18 = vector.shape_cast %17 : vector<8x128xf32> to vector<1x8x128xf32>
    %cst_6 = arith.constant dense<0.000000e+00> : vector<8x128xf32>
    %19 = vector.multi_reduction <add>, %18, %cst_6 [0] : vector<1x8x128xf32> to vector<8x128xf32>
    %20 = vector.shape_cast %19 : vector<8x128xf32> to vector<1x8x128xf32>
    %c0_7 = arith.constant 0 : index
    %c0_8 = arith.constant 0 : index
    %c0_9 = arith.constant 0 : index
    %21 = vector.load %arg3[%c0_7, %c0_8, %c0_9] : memref<1x8x128xf32, #tpu.memory_space<vmem>>, vector<1x8x128xf32>
    tpu.vector_store %arg3[%c0_7, %c0_8, %c0_9], %20 {strides = array<i32>} : memref<1x8x128xf32, #tpu.memory_space<vmem>>, vector<1x8x128xf32>,
    return
  }
  func.func @transform_0(%arg0: i32) -> (i32, i32) {
    %c0_i32 = arith.constant 0 : i32
    %c0_i32_0 = arith.constant 0 : i32
    return %arg0, %c0_i32 : i32, i32
  }
  func.func @transform_1(%arg0: i32) -> (i32, i32) {
    %c0_i32 = arith.constant 0 : i32
    %c0_i32_0 = arith.constant 0 : i32
    return %arg0, %c0_i32 : i32, i32
  }
  func.func @transform_2(%arg0: i32) -> (i32, i32, i32) {
    %c0_i32 = arith.constant 0 : i32
    %c0_i32_0 = arith.constant 0 : i32
    %c0_i32_1 = arith.constant 0 : i32
    return %arg0, %c0_i32, %c0_i32_0 : i32, i32, i32
  }
}

</mosaic_0001>

<llo_original>
// kernel: focal_binary_loss.1
$region0: #{focal_binary_loss.1}
  #allocation0 [shape = 'u32[]', space=smem, size = 0x4, offset = 0x4, fixed_abs, tag = 'smem constant byte address 0x4 - core index']
  #allocation1 [shape = 'u32[72,128]{1,0:T(1,128)}', space=vmem, size = 0x9000, scoped, tag = 'internal scratch']
  %s0 = inlined_call_operand.vmem [shape: f32[16,128], index: 0, kind: input, shape index: {}]
  %s1 = inlined_call_operand.vmem [shape: f32[16,128], index: 1, kind: input, shape index: {}]
  %s2 = inlined_call_operand.vmem [shape: f32[2,8,128], index: 2, kind: output, shape index: {}]
  %s3 = sld [smem:[#allocation0]]
  $region41: #{focal_binary_loss.1} parent=0
    _
  %s5 = ssub.s32 1, %s3
  %s6 = scalar_select 0, %s5, %s3
  loop: start=0, step=1, limit=4
  $region2: #{focal_binary_loss.1} parent=0 // loop_pre_header
    _
  $region3: #{focal_binary_loss.1} parent=0 // loop_header
    %s8 = sphi 0, %s12
    %p9 = scmp.ge.s32.totalorder %s8, 4
    %s18 = sphi 0, %s20
    %s21 = sphi 0, %s18
    %s22 = sphi 0, %s21
    %s38 = sphi 0, %s22
    %s44 = sphi 0, %s46
    %s47 = sphi 0, %s44
    %s48 = sphi 0, %s47
    %s64 = sphi 0, %s48
    %s70 = sphi 0, %s72
    %s73 = sphi 0, %s70
    %s74 = sphi 0, %s73
    %s90 = sphi 0, %s74
  $region4: #{focal_binary_loss.1} parent=0 // loop_header_branch
    %11 = sbr.rel (%p9) target = $region8
  $region5: #{focal_binary_loss.1} parent=0 // loop_body
    %s13 = ssub.s32 %s8, 1
    %s14 = ssub.s32 %s8, 2
    %s15 = sadd.s32 %s8, 1
    %s16 = ssub.s32 %s8, %s15
    %p17 = scmp.eq.s32.totalorder %s16, 0
    %s19 = sadd.s32 %s18, 1
    %s20 = scalar_select %p17, %s18, %s19
    %p23 = pneg %p17
    %p24 = scmp.eq.s32.totalorder %s8, 1
    %p25 = por %p23, %p24
    %p26 = scmp.ne.s32.totalorder %s18, %s21
    %p27 = scmp.eq.s32.totalorder %s8, 0
    %p28 = por %p26, %p27
    %p29 = scmp.ne.s32.totalorder %s18, %s21
    %p30 = scmp.eq.s32.totalorder %s13, 1
    %p31 = por %p29, %p30
    %p32 = scmp.ne.s32.totalorder %s21, %s22
    %p33 = scmp.eq.s32.totalorder %s13, 0
    %p34 = por %p32, %p33
    %p35 = scmp.ne.s32.totalorder %s21, %s22
    %p36 = scmp.eq.s32.totalorder %s14, 1
    %p37 = por %p35, %p36
    %p39 = scmp.ne.s32.totalorder %s22, %s38
    %p40 = scmp.eq.s32.totalorder %s14, 0
    %p41 = por %p39, %p40
    %s42 = ssub.s32 %s8, %s15
    %p43 = scmp.eq.s32.totalorder %s42, 0
    %s45 = sadd.s32 %s44, 1
    %s46 = scalar_select %p43, %s44, %s45
    %p49 = pneg %p43
    %p50 = scmp.eq.s32.totalorder %s8, 1
    %p51 = por %p49, %p50
    %p52 = scmp.ne.s32.totalorder %s44, %s47
    %p53 = scmp.eq.s32.totalorder %s8, 0
    %p54 = por %p52, %p53
    %p55 = scmp.ne.s32.totalorder %s44, %s47
    %p56 = scmp.eq.s32.totalorder %s13, 1
    %p57 = por %p55, %p56
    %p58 = scmp.ne.s32.totalorder %s47, %s48
    %p59 = scmp.eq.s32.totalorder %s13, 0
    %p60 = por %p58, %p59
    %p61 = scmp.ne.s32.totalorder %s47, %s48
    %p62 = scmp.eq.s32.totalorder %s14, 1
    %p63 = por %p61, %p62
    %p65 = scmp.ne.s32.totalorder %s48, %s64
    %p66 = scmp.eq.s32.totalorder %s14, 0
    %p67 = por %p65, %p66
    %s68 = ssub.s32 %s8, %s15
    %p69 = scmp.eq.s32.totalorder %s68, 0
    %s71 = sadd.s32 %s70, 1
    %s72 = scalar_select %p69, %s70, %s71
    %p75 = pneg %p69
    %p76 = scmp.eq.s32.totalorder %s8, 1
    %p77 = por %p75, %p76
    %p78 = scmp.ne.s32.totalorder %s70, %s73
    %p79 = scmp.eq.s32.totalorder %s8, 0
    %p80 = por %p78, %p79
    %p81 = scmp.ne.s32.totalorder %s70, %s73
    %p82 = scmp.eq.s32.totalorder %s13, 1
    %p83 = por %p81, %p82
    %p84 = scmp.ne.s32.totalorder %s73, %s74
    %p85 = scmp.eq.s32.totalorder %s13, 0
    %p86 = por %p84, %p85
    %p87 = scmp.ne.s32.totalorder %s73, %s74
    %p88 = scmp.eq.s32.totalorder %s14, 1
    %p89 = por %p87, %p88
    %p91 = scmp.ne.s32.totalorder %s74, %s90
    %p92 = scmp.eq.s32.totalorder %s14, 0
    %p93 = por %p91, %p92
    %p94 = scmp.le.s32.totalorder 1, %s8
    %p95 = scmp.lt.s32.totalorder %s8, 3
    %p96 = pnand %p94, %p95
    %p97 = pneg %p96
    // Predicated region
    $region9: #{focal_binary_loss.1} parent=5 // pred_check
      _
    $region10: #{focal_binary_loss.1} parent=5 // pred_check_branch
      %99 = sbr.rel (%p96) target = $region12
    $region11: #{focal_binary_loss.1} parent=5 // pred_region
      %s100 = ssub.s32 %s8, 1
    $region12: #{focal_binary_loss.1} parent=5 // pred_fallthru
      _
    %p101 = scmp.lt.s32.totalorder %s8, 2
    // Predicated region
    $region13: #{focal_binary_loss.1} parent=5 // pred_check
      %p102 = pneg %p101
    $region14: #{focal_binary_loss.1} parent=5 // pred_check_branch
      %104 = sbr.rel (%p102) target = $region16
    $region15: #{focal_binary_loss.1} parent=5 // pred_region
      // Predicated region
      $region17: #{focal_binary_loss.1} parent=15 // pred_check
        %p105 = pneg %p28
      $region18: #{focal_binary_loss.1} parent=15 // pred_check_branch
        %107 = sbr.rel (%p105) target = $region20
      $region19: #{focal_binary_loss.1} parent=15 // pred_region
        %p108 = scmp.lt.s32.totalorder %s8, 1
        %s109 = scalar_select %p108, %s8, 1
        %s110 = smul.addr %s109, 8
        %s111 = scalar_lea.vmem %s0, %s110
      $region20: #{focal_binary_loss.1} parent=15 // pred_fallthru
        _
      // Predicated region
      $region21: #{focal_binary_loss.1} parent=15 // pred_check
        %p112 = pneg %p54
      $region22: #{focal_binary_loss.1} parent=15 // pred_check_branch
        %114 = sbr.rel (%p112) target = $region24
      $region23: #{focal_binary_loss.1} parent=15 // pred_region
        %p115 = scmp.lt.s32.totalorder %s8, 1
        %s116 = scalar_select %p115, %s8, 1
        %s117 = smul.addr %s116, 8
        %s118 = scalar_lea.vmem %s1, %s117
      $region24: #{focal_binary_loss.1} parent=15 // pred_fallthru
        _
    $region16: #{focal_binary_loss.1} parent=5 // pred_fallthru
      _
    %p119 = scmp.le.s32.totalorder 1, %s8
    %p120 = scmp.lt.s32.totalorder %s8, 3
    %p121 = pnand %p119, %p120
    %p122 = pneg %p121
    // Predicated region
    $region25: #{focal_binary_loss.1} parent=5 // pred_check
      _
    $region26: #{focal_binary_loss.1} parent=5 // pred_check_branch
      %124 = sbr.rel (%p121) target = $region28
    $region27: #{focal_binary_loss.1} parent=5 // pred_region
      %s125 = ssub.s32 %s8, 1
      %p126 = scmp.lt.s32.totalorder %s13, 1
      %s127 = scalar_select %p126, %s13, 1
      %s128 = smul.addr %s127, 8
      %s129 = scalar_lea.vmem %s0, %s128
      %p130 = pneg %p34
      %p131 = pneg %p31
      %p132 = scmp.lt.s32.totalorder %s13, 1
      %s133 = scalar_select %p132, %s13, 1
      %s134 = smul.addr %s133, 8
      %s135 = scalar_lea.vmem %s1, %s134
      %p136 = pneg %p60
      %p137 = pneg %p57
      %p138 = pneg %p86
      %p139 = pneg %p83
      %p140 = scmp.lt.s32.totalorder %s13, 1
      %s141 = scalar_select %p140, %s13, 1
      %s142 = smul.addr %s141, 8
      %s143 = scalar_lea.vmem %s2, %s142
      %p144 = scmp.lt.s32.totalorder %s13, 1
      %s145 = scalar_select %p144, %s13, 1
      %s146 = smul.addr %s145, 8
      %s147 = scalar_lea.vmem %s0, %s146
      %p148 = scmp.lt.s32.totalorder %s13, 1
      %s149 = scalar_select %p148, %s13, 1
      %s150 = smul.addr %s149, 8
      %s151 = scalar_lea.vmem %s1, %s150
      %p152 = scmp.lt.s32.totalorder %s13, 1
      %s153 = scalar_select %p152, %s13, 1
      %s154 = smul.addr %s153, 8
      %s155 = scalar_lea.vmem %s2, %s154
      %v156 = vld [vmem:[%s147] sm:$0xff]
      %v157 = vld [vmem:[%s151] sm:$0xff]
      %v158 = vmax.f32 %v156, 0.0
      %v159 = vand.u32 2147483647, %v156
      %v160 = vsub.f32 0.0, %v159
      %v161 = vmul.f32 %v160, 1.442695
      %v162 = vpow.pop %v161
      %v163 = vadd.f32 %v162, 1.0
      %v164 = vlog2.pop %v163
      %v165 = vmul.f32 %v164, 0.6931472
      %v166 = vmul.f32 -0.5, %v162
      %v167 = vadd.f32 %v166, 1.0
      %v168 = vmul.f32 %v167, %v162
      %v169 = vand.u32 2147483647, %v162
      %vm170 = vcmp.lt.f32.partialorder %v169, 0.0004427343
      %v171 = vsel %vm170, %v168, %v165
      %v172 = vadd.f32 %v158, %v171
      %v173 = vsub.f32 %v172, %v156
      %v174 = vmin.f32 %v173, 23.02585
      %v175 = vmin.f32 %v172, 23.02585
      %v176 = vsub.f32 %v174, %v175
      %v177 = vmul.f32 %v157, %v176
      %v178 = vadd.f32 %v175, %v177
      %v179 = vadd.f32 %v178, 0.0
      %180 = vst [vmem:[%s155] sm:$0xff] %v179
      %p181 = scmp.lt.s32.totalorder %s13, 1
      %s182 = scalar_select %p181, %s13, 1
      %s183 = smul.addr %s182, 8
      %s184 = scalar_lea.vmem %s2, %s183
      // Predicated region
      $region29: #{focal_binary_loss.1} parent=27 // pred_check
        %p185 = pneg %p83
      $region30: #{focal_binary_loss.1} parent=27 // pred_check_branch
        %187 = sbr.rel (%p185) target = $region32
      $region31: #{focal_binary_loss.1} parent=27 // pred_region
        _
      $region32: #{focal_binary_loss.1} parent=27 // pred_fallthru
        _
    $region28: #{focal_binary_loss.1} parent=5 // pred_fallthru
      _
    %p188 = scmp.le.s32.totalorder 2, %s8
    // Predicated region
    $region33: #{focal_binary_loss.1} parent=5 // pred_check
      %p189 = pneg %p188
    $region34: #{focal_binary_loss.1} parent=5 // pred_check_branch
      %191 = sbr.rel (%p189) target = $region36
    $region35: #{focal_binary_loss.1} parent=5 // pred_region
      %s192 = ssub.s32 %s8, 2
      // Predicated region
      $region37: #{focal_binary_loss.1} parent=35 // pred_check
        %p193 = pneg %p89
      $region38: #{focal_binary_loss.1} parent=35 // pred_check_branch
        %195 = sbr.rel (%p193) target = $region40
      $region39: #{focal_binary_loss.1} parent=35 // pred_region
        %p196 = scmp.lt.s32.totalorder %s14, 1
        %s197 = scalar_select %p196, %s14, 1
        %s198 = smul.addr %s197, 8
        %s199 = scalar_lea.vmem %s2, %s198
      $region40: #{focal_binary_loss.1} parent=35 // pred_fallthru
        _
    $region36: #{focal_binary_loss.1} parent=5 // pred_fallthru
      _
  $region6: #{focal_binary_loss.1} parent=0 // loop_footer
    %s12 = sadd.s32 1, %s8
  $region7: #{focal_binary_loss.1} parent=0 // loop_footer_branch
    %7 = sbr.rel target = $region3
  $region8: #{focal_binary_loss.1} parent=0 // loop_exit
    _

</llo_original>
